<compile_context>
chip_gen: v5e
topology: v5e:2x2
jax: 0.10.0
libtpu: 0.0.40
codegen_flags: <defaults>
</compile_context>

<pallas_src>
import jax
import jax.numpy as jnp
from jax.experimental import pallas as pl
from jax.experimental.pallas import tpu as pltpu

L = 1.0


def temporal_before_kernel(tfeat_ref, tlogic_ref, tfeat_out_ref, tlogic_out_ref):
    tl = tlogic_ref[...]
    x = tfeat_ref[...] - (L * 0.5) - tl * 0.5
    # scale_feature: x >= 0 -> x - L ; x < 0 -> x + L   (single VPU select)
    tfeat_out_ref[...] = jnp.where(x >= 0.0, x - L, x + L)
    tlogic_out_ref[...] = (L - tl) * 0.5


def _sublane_align(dtype):
    itemsize = jnp.dtype(dtype).itemsize
    if itemsize >= 4:
        return 8
    if itemsize == 2:
        return 16
    return 32


def _pick_block_rows(rows, align, preferred):
    """Fixed-size, sublane-aligned block rows.  Shrinks (but stays aligned) so
    the grid has >= 2 steps whenever possible (v7x: 2 TensorCores)."""
    if rows >= 2 * preferred:
        return preferred
    half = pl.cdiv(rows, 2)
    half = pl.cdiv(half, align) * align
    return max(align, min(preferred, half))


def temporal_before(feature, logic, time_feature, time_logic,
                    *, lane_width=1024, preferred_block_rows=512,
                    min_pallas_elements=1 << 18,
                    vmem_limit_bytes=32 << 20):
    orig_shape = time_feature.shape
    total = int(time_feature.size)

    # ---- small-shape bailout: kernel-launch overhead dwarfs 16 KiB of HBM ----
    if total < min_pallas_elements:
        tf = time_feature - L * 0.5 - time_logic * 0.5
        tf = jnp.where(tf >= 0.0, tf - L, tf + L).astype(time_feature.dtype)
        tl = ((L - time_logic) * 0.5).astype(time_logic.dtype)
        return feature, logic, tf, tl

    # ---- lane-dense re-view: (rows, W), W a big multiple of 128 ----
    tf_flat = time_feature.reshape(-1)
    tl_flat = time_logic.reshape(-1)

    w = None
    for cand in (lane_width, 512, 256, 128):
        if cand <= lane_width and total % cand == 0:
            w = cand
            break
    pad = 0
    if w is None:
        # rare awkward total: pad the flat view to a multiple of lane_width
        w = lane_width
        padded = pl.cdiv(total, w) * w
        pad = padded - total
        tf_flat = jnp.pad(tf_flat, (0, pad))
        tl_flat = jnp.pad(tl_flat, (0, pad))

    rows = tf_flat.size // w
    tf2 = tf_flat.reshape(rows, w)
    tl2 = tl_flat.reshape(rows, w)

    align = _sublane_align(time_feature.dtype)
    br = _pick_block_rows(rows, align, preferred_block_rows)
    grid = (pl.cdiv(rows, br),)          # ragged last block handled by Pallas

    spec = pl.BlockSpec((br, w), lambda i: (i, 0))
    out_sds = jax.ShapeDtypeStruct((rows, w), time_feature.dtype)

    fn = pl.pallas_call(
        temporal_before_kernel,
        out_shape=(out_sds, out_sds),
        grid=grid,
        in_specs=[spec, spec],
        out_specs=(spec, spec),
        input_output_aliases={0: 0, 1: 1},
        compiler_params=pltpu.CompilerParams(
            dimension_semantics=("parallel",),
            vmem_limit_bytes=vmem_limit_bytes,
        ),
    )
    tf_out, tl_out = fn(tf2, tl2)

    if pad:
        tf_out = tf_out.reshape(-1)[:total]
        tl_out = tl_out.reshape(-1)[:total]
    tf_out = tf_out.reshape(orig_shape)
    tl_out = tl_out.reshape(orig_shape)

    # feature and logic are returned untouched (true pass-through, no copy).
    return feature, logic, tf_out, tl_out


def _reference(feature, logic, time_feature, time_logic):
    # Pure-JAX mirror of the PyTorch forward (scale_feature's two masks are
    # disjoint and computed from the original values -> a single where()).
    tf = time_feature - L / 2 - time_logic / 2
    tf = jnp.where(tf >= 0.0, tf - L, tf + L)
    tl = (L - time_logic) / 2
    return feature, logic, tf, tl


def _check(outs, refs):
    for o, r in zip(outs, refs):
        assert o.shape == r.shape and o.dtype == r.dtype
        assert jnp.allclose(o, r, atol=1e-6, rtol=1e-6), "mismatch vs reference"


if __name__ == "__main__":
    key = jax.random.PRNGKey(0)
    k0, k1, k2, k3, k4, k5 = jax.random.split(key, 6)

    # 1) Small TFLEX-like embedding batch -> exercises the fused-XLA bailout,
    #    then the forced Pallas path on the same data.
    B, D = 8, 256
    feature = jax.random.normal(k0, (B, D), jnp.float32)
    logic = jax.random.uniform(k1, (B, D), jnp.float32)
    time_feature = jax.random.uniform(k2, (B, D), jnp.float32, -1.0, 1.0)
    time_logic = jax.random.uniform(k3, (B, D), jnp.float32)

    refs_small = _reference(feature, logic, time_feature, time_logic)
    outs_bailout = jax.block_until_ready(
        temporal_before(feature, logic, time_feature, time_logic))
    _check(outs_bailout, refs_small)

    outs_forced = jax.block_until_ready(
        temporal_before(feature, logic, time_feature, time_logic,
                        min_pallas_elements=0))
    _check(outs_forced, refs_small)

    # 2) Awkward (non-128-multiple) shape forced through the kernel ->
    #    exercises the pad-to-lane-width fallback.
    tfo = jax.random.uniform(k4, (7, 300), jnp.float32, -1.0, 1.0)
    tlo = jax.random.uniform(k5, (7, 300), jnp.float32)
    outs_odd = jax.block_until_ready(
        temporal_before(tfo, tlo, tfo, tlo, min_pallas_elements=0))
    _check(outs_odd, _reference(tfo, tlo, tfo, tlo))

    # 3) Moderate shape that takes the Pallas kernel path by default
    #    (lane-dense 1024-wide view, cdiv grid, >= 2 parallel steps).
    B2, D2 = 512, 1024
    tf_big = jax.random.uniform(k2, (B2, D2), jnp.float32, -1.0, 1.0)
    tl_big = jax.random.uniform(k3, (B2, D2), jnp.float32)
    f_big = jax.random.normal(k0, (B2, D2), jnp.float32)
    l_big = jax.random.uniform(k1, (B2, D2), jnp.float32)
    outs_big = jax.block_until_ready(
        temporal_before(f_big, l_big, tf_big, tl_big))
    _check(outs_big, _reference(f_big, l_big, tf_big, tl_big))

    print("KERNEL_OK")
</pallas_src>

<mosaic_0001>
module attributes {stable_mosaic.version = 11 : i64} {
  func.func @temporal_before_kernel(%arg0: i32, %arg1: memref<8x1024xf32, #tpu.memory_space<vmem>>, %arg2: memref<8x1024xf32, #tpu.memory_space<vmem>>, %arg3: memref<8x1024xf32, #tpu.memory_space<vmem>>, %arg4: memref<8x1024xf32, #tpu.memory_space<vmem>>) attributes {dimension_semantics = [#tpu.dimension_semantics<parallel>], iteration_bounds = array<i64: 1>, scalar_prefetch = 0 : i64, scratch_operands = 0 : i64, tpu.core_type = #tpu.core_type<tc>, window_params = [{transform_indices = @transform_0, window_bounds = array<i64: 8, 1024>}, {transform_indices = @transform_1, window_bounds = array<i64: 8, 1024>}, {transform_indices = @transform_2, window_bounds = array<i64: 8, 1024>}, {transform_indices = @transform_3, window_bounds = array<i64: 8, 1024>}]} {
    %c0 = arith.constant 0 : index
    %c0_0 = arith.constant 0 : index
    %0 = vector.load %arg2[%c0, %c0_0] : memref<8x1024xf32, #tpu.memory_space<vmem>>, vector<8x1024xf32>
    %c0_1 = arith.constant 0 : index
    %c0_2 = arith.constant 0 : index
    %1 = vector.load %arg1[%c0_1, %c0_2] : memref<8x1024xf32, #tpu.memory_space<vmem>>, vector<8x1024xf32>
    %cst = arith.constant 5.000000e-01 : f32
    %2 = vector.broadcast %cst : f32 to vector<8x1024xf32>
    %3 = arith.subf %1, %2 : vector<8x1024xf32>
    %cst_3 = arith.constant 5.000000e-01 : f32
    %4 = vector.broadcast %cst_3 : f32 to vector<8x1024xf32>
    %5 = arith.mulf %0, %4 : vector<8x1024xf32>
    %6 = arith.subf %3, %5 : vector<8x1024xf32>
    %cst_4 = arith.constant 0.000000e+00 : f32
    %7 = vector.broadcast %cst_4 : f32 to vector<8x1024xf32>
    %8 = arith.cmpf oge, %6, %7 : vector<8x1024xf32>
    %cst_5 = arith.constant 1.000000e+00 : f32
    %9 = vector.broadcast %cst_5 : f32 to vector<8x1024xf32>
    %10 = arith.subf %6, %9 : vector<8x1024xf32>
    %cst_6 = arith.constant 1.000000e+00 : f32
    %11 = vector.broadcast %cst_6 : f32 to vector<8x1024xf32>
    %12 = arith.addf %6, %11 : vector<8x1024xf32>
    %13 = arith.select %8, %10, %12 : vector<8x1024xi1>, vector<8x1024xf32>
    %c0_7 = arith.constant 0 : index
    %c0_8 = arith.constant 0 : index
    %14 = vector.load %arg3[%c0_7, %c0_8] : memref<8x1024xf32, #tpu.memory_space<vmem>>, vector<8x1024xf32>
    tpu.vector_store %arg3[%c0_7, %c0_8], %13 {strides = array<i32>} : memref<8x1024xf32, #tpu.memory_space<vmem>>, vector<8x1024xf32>,
    %cst_9 = arith.constant 1.000000e+00 : f32
    %15 = vector.broadcast %cst_9 : f32 to vector<8x1024xf32>
    %16 = arith.subf %15, %0 : vector<8x1024xf32>
    %cst_10 = arith.constant 5.000000e-01 : f32
    %17 = vector.broadcast %cst_10 : f32 to vector<8x1024xf32>
    %18 = arith.mulf %16, %17 : vector<8x1024xf32>
    %c0_11 = arith.constant 0 : index
    %c0_12 = arith.constant 0 : index
    %19 = vector.load %arg4[%c0_11, %c0_12] : memref<8x1024xf32, #tpu.memory_space<vmem>>, vector<8x1024xf32>
    tpu.vector_store %arg4[%c0_11, %c0_12], %18 {strides = array<i32>} : memref<8x1024xf32, #tpu.memory_space<vmem>>, vector<8x1024xf32>,
    return
  }
  func.func @transform_0(%arg0: i32) -> (i32, i32) {
    %c0_i32 = arith.constant 0 : i32
    %c0_i32_0 = arith.constant 0 : i32
    return %arg0, %c0_i32 : i32, i32
  }
  func.func @transform_1(%arg0: i32) -> (i32, i32) {
    %c0_i32 = arith.constant 0 : i32
    %c0_i32_0 = arith.constant 0 : i32
    return %arg0, %c0_i32 : i32, i32
  }
  func.func @transform_2(%arg0: i32) -> (i32, i32) {
    %c0_i32 = arith.constant 0 : i32
    %c0_i32_0 = arith.constant 0 : i32
    return %arg0, %c0_i32 : i32, i32
  }
  func.func @transform_3(%arg0: i32) -> (i32, i32) {
    %c0_i32 = arith.constant 0 : i32
    %c0_i32_0 = arith.constant 0 : i32
    return %arg0, %c0_i32 : i32, i32
  }
}

</mosaic_0001>

<llo_original>
// kernel: tpu_custom_call.1
$region0: #{tpu_custom_call.1}
  #allocation0 [shape = 'u32[]', space=smem, size = 0x4, offset = 0x4, fixed_abs, tag = 'smem constant byte address 0x4 - core index']
  #allocation1 [shape = 'u32[72,128]{1,0:T(1,128)}', space=vmem, size = 0x9000, scoped, tag = 'internal scratch']
  %s0 = inlined_call_operand.hbm [shape: f32[2,1024], index: 0, kind: input, shape index: {}, may-alias: {0,2}]
  %s1 = inlined_call_operand.hbm [shape: f32[2,1024], index: 1, kind: input, shape index: {}, may-alias: {1,3}]
  %s2 = inlined_call_operand.hbm [shape: f32[2,1024], index: 2, kind: output, shape index: {0}, may-alias: {0,2}]
  %s3 = inlined_call_operand.hbm [shape: f32[2,1024], index: 3, kind: output, shape index: {1}, may-alias: {1,3}]
  %4 = xla_tuple %s2, %s3
  %s5 = sld [smem:[#allocation0]]
  $region34: #{tpu_custom_call.1} parent=0
    _
  %s7 = ssub.s32 1, %s5
  %s8 = scalar_select 0, %s7, %s5
  $region1: #{tpu_custom_call.1} parent=0
    #allocation2 [shape = 'u8[32768]{0}', space=vmem, size = 0x8000, scoped, tag = 'input window, operand 0, single buffered']
    #allocation3 [shape = 's32[1]{0}', space=sflag, size = 0x4, scoped, tag = 'scoped memory for tpu_custom_call.1']
    #allocation4 [shape = 's32[1]{0}', space=sflag, size = 0x4, scoped, tag = 'scoped memory for tpu_custom_call.1']
    #allocation5 [shape = 'u8[32768]{0}', space=vmem, size = 0x8000, scoped, tag = 'input window, operand 1, single buffered']
    #allocation6 [shape = 's32[1]{0}', space=sflag, size = 0x4, scoped, tag = 'scoped memory for tpu_custom_call.1']
    #allocation7 [shape = 'u8[32768]{0}', space=vmem, size = 0x8000, scoped, tag = 'output window, operand 0, single buffered']
    #allocation8 [shape = 'u8[32768]{0}', space=vmem, size = 0x8000, scoped, tag = 'output window, operand 1, single buffered']
    #allocation9 [shape = 's32[1]{0}', space=sflag, size = 0x4, scoped, tag = 'scoped memory for tpu_custom_call.1']
    %9 = vsyncpa [#allocation3], 0
    %10 = vsyncpa [#allocation6], 0
    %11 = vsyncpa [#allocation4], 0
    %12 = vsyncpa [#allocation9], 0
    // Predicated region
    $region2: #{tpu_custom_call.1} parent=1 // pred_check
      _
    $region3: #{tpu_custom_call.1} parent=1 // pred_check_branch
      %14 = sbr.rel (0) target = $region5
    $region4: #{tpu_custom_call.1} parent=1 // pred_region
      %16 = vsyncadd [#allocation3], 768
      %s17 = sshll.u32 %s0, 4
      %s18 = int_to_ptr.hbm [resolvable:$true] %s17
      %s19 = sshll.u32 [#allocation2], 4
      %s20 = int_to_ptr.vmem [resolvable:$true] %s19
      %25 = dma.hbm_to_vmem [thread:$0]  %s18, 256, %s20, [#allocation3], 256, 256, 16
    $region5: #{tpu_custom_call.1} parent=1 // pred_fallthru
      _
    // Predicated region
    $region6: #{tpu_custom_call.1} parent=1 // pred_check
      _
    $region7: #{tpu_custom_call.1} parent=1 // pred_check_branch
      %27 = sbr.rel (0) target = $region9
    $region8: #{tpu_custom_call.1} parent=1 // pred_region
      %29 = vsyncadd [#allocation6], 768
      %s30 = sshll.u32 %s1, 4
      %s31 = int_to_ptr.hbm [resolvable:$true] %s30
      %s32 = sshll.u32 [#allocation5], 4
      %s33 = int_to_ptr.vmem [resolvable:$true] %s32
      %38 = dma.hbm_to_vmem [thread:$0]  %s31, 256, %s33, [#allocation6], 256, 256, 16
    $region9: #{tpu_custom_call.1} parent=1 // pred_fallthru
      _
    // Predicated region
    $region10: #{tpu_custom_call.1} parent=1 // pred_check
      _
    $region11: #{tpu_custom_call.1} parent=1 // pred_check_branch
      %40 = sbr.rel (0) target = $region13
    $region12: #{tpu_custom_call.1} parent=1 // pred_region
      %42 = dma.done [#allocation3], 1024
    $region13: #{tpu_custom_call.1} parent=1 // pred_fallthru
      _
    // Predicated region
    $region14: #{tpu_custom_call.1} parent=1 // pred_check
      _
    $region15: #{tpu_custom_call.1} parent=1 // pred_check_branch
      %44 = sbr.rel (0) target = $region17
    $region16: #{tpu_custom_call.1} parent=1 // pred_region
      %46 = dma.done [#allocation6], 1024
    $region17: #{tpu_custom_call.1} parent=1 // pred_fallthru
      _
    %v47 = vld [vmem:[#allocation5] sm:$0xff]
    %v48 = vld [vmem:[#allocation5 + $0x8] sm:$0xff]
    %v49 = vld [vmem:[#allocation5 + $0x10] sm:$0xff]
    %v50 = vld [vmem:[#allocation5 + $0x18] sm:$0xff]
    %v51 = vld [vmem:[#allocation5 + $0x20] sm:$0xff]
    %v52 = vld [vmem:[#allocation5 + $0x28] sm:$0xff]
    %v53 = vld [vmem:[#allocation5 + $0x30] sm:$0xff]
    %v54 = vld [vmem:[#allocation5 + $0x38] sm:$0xff]
    %v55 = vld [vmem:[#allocation2] sm:$0xff]
    %v56 = vld [vmem:[#allocation2 + $0x8] sm:$0xff]
    %v57 = vld [vmem:[#allocation2 + $0x10] sm:$0xff]
    %v58 = vld [vmem:[#allocation2 + $0x18] sm:$0xff]
    %v59 = vld [vmem:[#allocation2 + $0x20] sm:$0xff]
    %v60 = vld [vmem:[#allocation2 + $0x28] sm:$0xff]
    %v61 = vld [vmem:[#allocation2 + $0x30] sm:$0xff]
    %v62 = vld [vmem:[#allocation2 + $0x38] sm:$0xff]
    %v63 = vsub.f32 %v55, 0.5
    %v64 = vsub.f32 %v56, 0.5
    %v65 = vsub.f32 %v57, 0.5
    %v66 = vsub.f32 %v58, 0.5
    %v67 = vsub.f32 %v59, 0.5
    %v68 = vsub.f32 %v60, 0.5
    %v69 = vsub.f32 %v61, 0.5
    %v70 = vsub.f32 %v62, 0.5
    %v71 = vmul.f32 %v47, 0.5
    %v72 = vmul.f32 %v48, 0.5
    %v73 = vmul.f32 %v49, 0.5
    %v74 = vmul.f32 %v50, 0.5
    %v75 = vmul.f32 %v51, 0.5
    %v76 = vmul.f32 %v52, 0.5
    %v77 = vmul.f32 %v53, 0.5
    %v78 = vmul.f32 %v54, 0.5
    %v79 = vsub.f32 %v63, %v71
    %v80 = vsub.f32 %v64, %v72
    %v81 = vsub.f32 %v65, %v73
    %v82 = vsub.f32 %v66, %v74
    %v83 = vsub.f32 %v67, %v75
    %v84 = vsub.f32 %v68, %v76
    %v85 = vsub.f32 %v69, %v77
    %v86 = vsub.f32 %v70, %v78
    %vm87 = vcmp.ge.f32.partialorder %v79, 0.0
    %vm88 = vcmp.ge.f32.partialorder %v80, 0.0
    %vm89 = vcmp.ge.f32.partialorder %v81, 0.0
    %vm90 = vcmp.ge.f32.partialorder %v82, 0.0
    %vm91 = vcmp.ge.f32.partialorder %v83, 0.0
    %vm92 = vcmp.ge.f32.partialorder %v84, 0.0
    %vm93 = vcmp.ge.f32.partialorder %v85, 0.0
    %vm94 = vcmp.ge.f32.partialorder %v86, 0.0
    %v95 = vsub.f32 %v79, 1.0
    %v96 = vsub.f32 %v80, 1.0
    %v97 = vsub.f32 %v81, 1.0
    %v98 = vsub.f32 %v82, 1.0
    %v99 = vsub.f32 %v83, 1.0
    %v100 = vsub.f32 %v84, 1.0
    %v101 = vsub.f32 %v85, 1.0
    %v102 = vsub.f32 %v86, 1.0
    %v103 = vadd.f32 %v79, 1.0
    %v104 = vadd.f32 %v80, 1.0
    %v105 = vadd.f32 %v81, 1.0
    %v106 = vadd.f32 %v82, 1.0
    %v107 = vadd.f32 %v83, 1.0
    %v108 = vadd.f32 %v84, 1.0
    %v109 = vadd.f32 %v85, 1.0
    %v110 = vadd.f32 %v86, 1.0
    %v111 = vsel %vm87, %v95, %v103
    %v112 = vsel %vm88, %v96, %v104
    %v113 = vsel %vm89, %v97, %v105
    %v114 = vsel %vm90, %v98, %v106
    %v115 = vsel %vm91, %v99, %v107
    %v116 = vsel %vm92, %v100, %v108
    %v117 = vsel %vm93, %v101, %v109
    %v118 = vsel %vm94, %v102, %v110
    %119 = vst [vmem:[#allocation7] sm:$0xff] %v111
    %120 = vst [vmem:[#allocation7 + $0x8] sm:$0xff] %v112
    %121 = vst [vmem:[#allocation7 + $0x10] sm:$0xff] %v113
    %122 = vst [vmem:[#allocation7 + $0x18] sm:$0xff] %v114
    %123 = vst [vmem:[#allocation7 + $0x20] sm:$0xff] %v115
    %124 = vst [vmem:[#allocation7 + $0x28] sm:$0xff] %v116
    %125 = vst [vmem:[#allocation7 + $0x30] sm:$0xff] %v117
    %126 = vst [vmem:[#allocation7 + $0x38] sm:$0xff] %v118
    %v127 = vsub.f32 1.0, %v47
    %v128 = vsub.f32 1.0, %v48
    %v129 = vsub.f32 1.0, %v49
    %v130 = vsub.f32 1.0, %v50
    %v131 = vsub.f32 1.0, %v51
    %v132 = vsub.f32 1.0, %v52
    %v133 = vsub.f32 1.0, %v53
    %v134 = vsub.f32 1.0, %v54
    %v135 = vmul.f32 %v127, 0.5
    %v136 = vmul.f32 %v128, 0.5
    %v137 = vmul.f32 %v129, 0.5
    %v138 = vmul.f32 %v130, 0.5
    %v139 = vmul.f32 %v131, 0.5
    %v140 = vmul.f32 %v132, 0.5
    %v141 = vmul.f32 %v133, 0.5
    %v142 = vmul.f32 %v134, 0.5
    %143 = vst [vmem:[#allocation8] sm:$0xff] %v135
    %144 = vst [vmem:[#allocation8 + $0x8] sm:$0xff] %v136
    %145 = vst [vmem:[#allocation8 + $0x10] sm:$0xff] %v137
    %146 = vst [vmem:[#allocation8 + $0x18] sm:$0xff] %v138
    %147 = vst [vmem:[#allocation8 + $0x20] sm:$0xff] %v139
    %148 = vst [vmem:[#allocation8 + $0x28] sm:$0xff] %v140
    %149 = vst [vmem:[#allocation8 + $0x30] sm:$0xff] %v141
    %150 = vst [vmem:[#allocation8 + $0x38] sm:$0xff] %v142
    // Predicated region
    $region18: #{tpu_custom_call.1} parent=1 // pred_check
      _
    $region19: #{tpu_custom_call.1} parent=1 // pred_check_branch
      %152 = sbr.rel (0) target = $region21
    $region20: #{tpu_custom_call.1} parent=1 // pred_region
      %154 = vsyncadd [#allocation4], 768
      %s155 = sshll.u32 [#allocation7], 4
      %s156 = int_to_ptr.vmem [resolvable:$true] %s155
      %s157 = sshll.u32 %s2, 4
      %s158 = int_to_ptr.hbm [resolvable:$true] %s157
      %163 = dma.vmem_to_hbm [thread:$0]  %s156, 256, %s158, [#allocation4], 256, 256, 16
    $region21: #{tpu_custom_call.1} parent=1 // pred_fallthru
      _
    // Predicated region
    $region22: #{tpu_custom_call.1} parent=1 // pred_check
      _
    $region23: #{tpu_custom_call.1} parent=1 // pred_check_branch
      %165 = sbr.rel (0) target = $region25
    $region24: #{tpu_custom_call.1} parent=1 // pred_region
      %167 = vsyncadd [#allocation9], 768
      %s168 = sshll.u32 [#allocation8], 4
      %s169 = int_to_ptr.vmem [resolvable:$true] %s168
      %s170 = sshll.u32 %s3, 4
      %s171 = int_to_ptr.hbm [resolvable:$true] %s170
      %176 = dma.vmem_to_hbm [thread:$0]  %s169, 256, %s171, [#allocation9], 256, 256, 16
    $region25: #{tpu_custom_call.1} parent=1 // pred_fallthru
      _
    // Predicated region
    $region26: #{tpu_custom_call.1} parent=1 // pred_check
      _
    $region27: #{tpu_custom_call.1} parent=1 // pred_check_branch
      %178 = sbr.rel (0) target = $region29
    $region28: #{tpu_custom_call.1} parent=1 // pred_region
      %180 = dma.done [#allocation4], 1024
    $region29: #{tpu_custom_call.1} parent=1 // pred_fallthru
      _
    // Predicated region
    $region30: #{tpu_custom_call.1} parent=1 // pred_check
      _
    $region31: #{tpu_custom_call.1} parent=1 // pred_check_branch
      %182 = sbr.rel (0) target = $region33
    $region32: #{tpu_custom_call.1} parent=1 // pred_region
      %184 = dma.done [#allocation9], 1024
    $region33: #{tpu_custom_call.1} parent=1 // pred_fallthru
      _
    %185 = vsyncpa [#allocation3], 1
    %186 = vsyncpa [#allocation6], 1
    %187 = vsyncpa [#allocation4], 1
    %188 = vsyncpa [#allocation9], 1

</llo_original>
